<compile_context>
chip_gen: v7x
topology: tpu7x:2x2x1
jax: 0.10.0
libtpu: 0.0.40
codegen_flags: <defaults>
</compile_context>

<pallas_src>
import jax
import jax.numpy as jnp
from jax.experimental import pallas as pl
from jax.experimental.pallas import tpu as pltpu


def ga_kernel(x_ref, w1_ref, b1_ref, w2_ref, b2_ref, o_ref):
    # x_ref/o_ref: (Nb, C, T) channel-major tiles, lane-dense on the pixel axis
    # w1_ref/w2_ref: (C, C) PyTorch (out, in) layout (f32 or bf16)
    # b1_ref/b2_ref: (C, 1) f32
    w1 = w1_ref[...]
    w2 = w2_ref[...]
    b1 = b1_ref[...]
    b2 = b2_ref[...]
    nb = x_ref.shape[0]
    for b in range(nb):                       # small static unroll (Nb <= 8)
        x = x_ref[b]                          # (C, T), kept in input dtype
        h = jnp.dot(w1, x, preferred_element_type=jnp.float32) + b1
        h = jnp.maximum(h, 0.0)               # ReLU (f32)
        y = jnp.dot(w2, h.astype(w2.dtype),
                    preferred_element_type=jnp.float32) + b2
        o_ref[b] = jax.nn.sigmoid(y).astype(o_ref.dtype)   # exact sigmoid


def _largest_divisor_leq(n, cap):
    cap = max(1, min(n, int(cap)))
    for d in range(cap, 0, -1):
        if n % d == 0:
            return d
    return 1


def _pick_tiles(N, C, HW, itemsize):
    """Choose (Nb, pixel_tile, padded_HW) under a VMEM byte budget."""
    # One x tile <= ~3 MiB => double-buffered input + output <= ~12 MiB,
    # which fits v5e's 16 MiB scoped-VMEM default and leaves headroom on v7x.
    MAX_TILE_BYTES = 3 * 1024 * 1024
    row_bytes = C * itemsize
    max_t = max(128, (MAX_TILE_BYTES // row_bytes) // 128 * 128)

    # --- pixel tile (multiple of 128, or the full extent) ---
    if HW <= max_t:
        t, hw_pad = HW, HW                    # full extent: always legal
    elif HW % 128 == 0:
        best = 0
        for d in range(max_t // 128, 0, -1):  # largest 128-multiple divisor
            if HW % (128 * d) == 0:
                best = 128 * d
                break
        if best >= max(512, max_t // 4):
            t, hw_pad = best, HW              # exact division, no padding
        else:                                 # pathological divisor structure
            t = max_t
            hw_pad = pl.cdiv(HW, t) * t
    else:
        # Ragged pixel count: fall back to padding once (correct, slower).
        # TODO(synk): mask the last tile's store in-kernel instead of padding.
        t = max_t
        hw_pad = pl.cdiv(HW, t) * t

    # --- batch block (only matters when images are small) ---
    desired = max(1, MAX_TILE_BYTES // max(1, row_bytes * t))
    desired = min(desired, 8)                 # bound the unrolled loop size
    Nb = _largest_divisor_leq(N, desired)

    # v7x has two TensorCores: make sure the grid has >= 2 steps if we can.
    hw_steps = hw_pad // t
    if (N // Nb) * hw_steps < 2:
        if N >= 2:
            Nb = _largest_divisor_leq(N, N // 2)
        elif t % 256 == 0 and t >= 256:
            t = t // 2                        # t was == hw_pad, still divides
    return Nb, t, hw_pad


def ga_forward(x_nchw, w1, b1, w2, b2):
    """GA forward pass.

    x_nchw: (N, C, H, W)  float32 or bfloat16
    w1, w2: (C, C)  PyTorch Conv2d 1x1 weight layout (out_channels, in_channels)
    b1, b2: (C,)
    """
    N, C, H, W = x_nchw.shape
    HW = H * W
    itemsize = jnp.dtype(x_nchw.dtype).itemsize
    Nb, t, hw_pad = _pick_tiles(N, C, HW, itemsize)
    assert N % Nb == 0 and hw_pad % t == 0

    x3d = x_nchw.reshape(N, C, HW)            # channel-major view, no transpose
    if hw_pad != HW:
        x3d = jnp.pad(x3d, ((0, 0), (0, 0), (0, hw_pad - HW)))

    # Cast weights ONCE in the wrapper: bf16 activations get bf16 weights so
    # the MXU uses its native bf16 -> f32 path (no per-step full-tile up-cast).
    w_dtype = jnp.bfloat16 if x_nchw.dtype == jnp.bfloat16 else jnp.float32
    w1c = w1.astype(w_dtype)
    w2c = w2.astype(w_dtype)
    b1c = b1.reshape(C, 1).astype(jnp.float32)
    b2c = b2.reshape(C, 1).astype(jnp.float32)

    out3d = pl.pallas_call(
        ga_kernel,
        out_shape=jax.ShapeDtypeStruct((N, C, hw_pad), x_nchw.dtype),
        grid_spec=pl.GridSpec(
            grid=(N // Nb, hw_pad // t),
            in_specs=[
                pl.BlockSpec((Nb, C, t), lambda n, i: (n, 0, i)),   # x tile
                pl.BlockSpec((C, C), lambda n, i: (0, 0)),          # w1 (resident)
                pl.BlockSpec((C, 1), lambda n, i: (0, 0)),          # b1
                pl.BlockSpec((C, C), lambda n, i: (0, 0)),          # w2
                pl.BlockSpec((C, 1), lambda n, i: (0, 0)),          # b2
            ],
            out_specs=pl.BlockSpec((Nb, C, t), lambda n, i: (n, 0, i)),
        ),
        compiler_params=pltpu.CompilerParams(
            dimension_semantics=("parallel", "parallel"),
        ),
    )(x3d, w1c, b1c, w2c, b2c)

    if hw_pad != HW:
        out3d = out3d[:, :, :HW]
    return out3d.reshape(N, C, H, W)


def ga_reference(x_nchw, w1, b1, w2, b2):
    """Pure-JAX reference of the PyTorch forward (1x1 conv == per-pixel matmul)."""
    h = jnp.einsum("oi,nihw->nohw", w1, x_nchw) + b1[None, :, None, None]
    h = jnp.maximum(h, 0.0)
    y = jnp.einsum("oi,nihw->nohw", w2, h) + b2[None, :, None, None]
    return jax.nn.sigmoid(y)


if __name__ == "__main__":
    key = jax.random.PRNGKey(0)
    k_x, k_w1, k_b1, k_w2, k_b2 = jax.random.split(key, 5)

    # Small shapes consistent with GA(dim=C): NCHW input with C channels.
    N, C, H, W = 2, 32, 16, 16
    x = jax.random.normal(k_x, (N, C, H, W), dtype=jnp.float32)

    # Deterministic synthetic parameters, PyTorch Conv2d(kernel_size=1) layout
    # squeezed to (out_channels, in_channels).
    scale = 1.0 / jnp.sqrt(jnp.float32(C))
    w1 = jax.random.uniform(k_w1, (C, C), jnp.float32, -scale, scale)
    b1 = jax.random.uniform(k_b1, (C,), jnp.float32, -scale, scale)
    w2 = jax.random.uniform(k_w2, (C, C), jnp.float32, -scale, scale)
    b2 = jax.random.uniform(k_b2, (C,), jnp.float32, -scale, scale)

    # f32 path: must match the reference tightly.
    out = jax.block_until_ready(ga_forward(x, w1, b1, w2, b2))
    ref = ga_reference(x, w1, b1, w2, b2)
    assert out.shape == (N, C, H, W)
    assert jnp.allclose(out, ref, atol=1e-5, rtol=1e-5), "f32 mismatch vs reference"

    # bf16 path: native bf16 MXU, loose tolerance (sigmoid output range [0,1]).
    x_bf = x.astype(jnp.bfloat16)
    out_bf = jax.block_until_ready(ga_forward(x_bf, w1, b1, w2, b2))
    ref_bf = ga_reference(x_bf.astype(jnp.float32),
                          w1.astype(jnp.bfloat16).astype(jnp.float32), b1,
                          w2.astype(jnp.bfloat16).astype(jnp.float32), b2)
    assert out_bf.dtype == jnp.bfloat16
    assert jnp.allclose(out_bf.astype(jnp.float32), ref_bf, atol=5e-2), \
        "bf16 mismatch vs reference"

    print("KERNEL_OK")
</pallas_src>

<mosaic_0001>
module attributes {stable_mosaic.version = 11 : i64} {
  func.func @ga_kernel(%arg0: i32, %arg1: i32, %arg2: memref<1x32x256xf32, #tpu.memory_space<vmem>>, %arg3: memref<32x32xf32, #tpu.memory_space<vmem>>, %arg4: memref<32x1xf32, #tpu.memory_space<vmem>>, %arg5: memref<32x32xf32, #tpu.memory_space<vmem>>, %arg6: memref<32x1xf32, #tpu.memory_space<vmem>>, %arg7: memref<1x32x256xf32, #tpu.memory_space<vmem>>) attributes {dimension_semantics = [#tpu.dimension_semantics<parallel>, #tpu.dimension_semantics<parallel>], iteration_bounds = array<i64: 2, 1>, scalar_prefetch = 0 : i64, scratch_operands = 0 : i64, tpu.core_type = #tpu.core_type<tc>, window_params = [{transform_indices = @transform_0, window_bounds = array<i64: 1, 32, 256>}, {pipeline_mode = #tpu.pipeline_mode<synchronous>, transform_indices = @transform_1, window_bounds = array<i64: 32, 32>}, {pipeline_mode = #tpu.pipeline_mode<synchronous>, transform_indices = @transform_2, window_bounds = array<i64: 32, 1>}, {pipeline_mode = #tpu.pipeline_mode<synchronous>, transform_indices = @transform_3, window_bounds = array<i64: 32, 32>}, {pipeline_mode = #tpu.pipeline_mode<synchronous>, transform_indices = @transform_4, window_bounds = array<i64: 32, 1>}, {transform_indices = @transform_5, window_bounds = array<i64: 1, 32, 256>}]} {
    %c0 = arith.constant 0 : index
    %c0_0 = arith.constant 0 : index
    %0 = vector.load %arg3[%c0, %c0_0] : memref<32x32xf32, #tpu.memory_space<vmem>>, vector<32x32xf32>
    %c0_1 = arith.constant 0 : index
    %c0_2 = arith.constant 0 : index
    %1 = vector.load %arg5[%c0_1, %c0_2] : memref<32x32xf32, #tpu.memory_space<vmem>>, vector<32x32xf32>
    %c0_3 = arith.constant 0 : index
    %c0_4 = arith.constant 0 : index
    %2 = vector.load %arg4[%c0_3, %c0_4] : memref<32x1xf32, #tpu.memory_space<vmem>>, vector<32x1xf32>
    %c0_5 = arith.constant 0 : index
    %c0_6 = arith.constant 0 : index
    %3 = vector.load %arg6[%c0_5, %c0_6] : memref<32x1xf32, #tpu.memory_space<vmem>>, vector<32x1xf32>
    %c0_7 = arith.constant 0 : index
    %c0_8 = arith.constant 0 : index
    %c0_9 = arith.constant 0 : index
    %4 = vector.load %arg2[%c0_7, %c0_8, %c0_9] : memref<1x32x256xf32, #tpu.memory_space<vmem>>, vector<1x32x256xf32>
    %5 = vector.shape_cast %4 : vector<1x32x256xf32> to vector<32x256xf32>
    %cst = arith.constant dense<0.000000e+00> : vector<32x256xf32>
    %6 = tpu.matmul %0, %5, %cst {dimension_numbers = #tpu.dot_dimension_numbers<[1], [0], [0], [1], [0, 0, 1, 1], [], []>} : vector<32x32xf32>, vector<32x256xf32>, vector<32x256xf32> -> vector<32x256xf32>
    %7 = vector.broadcast %2 : vector<32x1xf32> to vector<32x256xf32>
    %8 = arith.addf %6, %7 : vector<32x256xf32>
    %cst_10 = arith.constant 0.000000e+00 : f32
    %9 = vector.broadcast %cst_10 : f32 to vector<32x256xf32>
    %10 = arith.maximumf %8, %9 : vector<32x256xf32>
    %cst_11 = arith.constant dense<0.000000e+00> : vector<32x256xf32>
    %11 = tpu.matmul %1, %10, %cst_11 {dimension_numbers = #tpu.dot_dimension_numbers<[1], [0], [0], [1], [0, 0, 1, 1], [], []>} : vector<32x32xf32>, vector<32x256xf32>, vector<32x256xf32> -> vector<32x256xf32>
    %12 = vector.broadcast %3 : vector<32x1xf32> to vector<32x256xf32>
    %13 = arith.addf %11, %12 : vector<32x256xf32>
    %14 = arith.negf %13 : vector<32x256xf32>
    %15 = math.exp %14 : vector<32x256xf32>
    %cst_12 = arith.constant 1.000000e+00 : f32
    %16 = vector.broadcast %cst_12 : f32 to vector<32x256xf32>
    %17 = arith.addf %16, %15 : vector<32x256xf32>
    %18 = arith.divf %16, %17 : vector<32x256xf32>
    %c0_13 = arith.constant 0 : index
    %c0_14 = arith.constant 0 : index
    %c0_15 = arith.constant 0 : index
    %19 = vector.load %arg7[%c0_13, %c0_14, %c0_15] : memref<1x32x256xf32, #tpu.memory_space<vmem>>, vector<1x32x256xf32>
    %20 = vector.shape_cast %19 : vector<1x32x256xf32> to vector<32x256xf32>
    %21 = vector.shape_cast %18 : vector<32x256xf32> to vector<1x32x256xf32>
    tpu.vector_store %arg7[%c0_13, %c0_14, %c0_15], %21 {strides = array<i32>} : memref<1x32x256xf32, #tpu.memory_space<vmem>>, vector<1x32x256xf32>,
    return
  }
  func.func @transform_0(%arg0: i32, %arg1: i32) -> (i32, i32, i32) {
    %c0_i32 = arith.constant 0 : i32
    %c0_i32_0 = arith.constant 0 : i32
    return %arg0, %c0_i32, %arg1 : i32, i32, i32
  }
  func.func @transform_1(%arg0: i32, %arg1: i32) -> (i32, i32) {
    %c0_i32 = arith.constant 0 : i32
    %c0_i32_0 = arith.constant 0 : i32
    %c0_i32_1 = arith.constant 0 : i32
    return %c0_i32, %c0_i32_0 : i32, i32
  }
  func.func @transform_2(%arg0: i32, %arg1: i32) -> (i32, i32) {
    %c0_i32 = arith.constant 0 : i32
    %c0_i32_0 = arith.constant 0 : i32
    %c0_i32_1 = arith.constant 0 : i32
    return %c0_i32, %c0_i32_0 : i32, i32
  }
  func.func @transform_3(%arg0: i32, %arg1: i32) -> (i32, i32) {
    %c0_i32 = arith.constant 0 : i32
    %c0_i32_0 = arith.constant 0 : i32
    %c0_i32_1 = arith.constant 0 : i32
    return %c0_i32, %c0_i32_0 : i32, i32
  }
  func.func @transform_4(%arg0: i32, %arg1: i32) -> (i32, i32) {
    %c0_i32 = arith.constant 0 : i32
    %c0_i32_0 = arith.constant 0 : i32
    %c0_i32_1 = arith.constant 0 : i32
    return %c0_i32, %c0_i32_0 : i32, i32
  }
  func.func @transform_5(%arg0: i32, %arg1: i32) -> (i32, i32, i32) {
    %c0_i32 = arith.constant 0 : i32
    %c0_i32_0 = arith.constant 0 : i32
    return %arg0, %c0_i32, %arg1 : i32, i32, i32
  }
}

</mosaic_0001>

<llo_original>
// kernel: tpu_custom_call.1
$region0: #{tpu_custom_call.1}
  #allocation0 [shape = 'u32[]', space=smem, size = 0x4, offset = 0x4, fixed_abs, tag = 'smem constant byte address 0x4 - core index']
  #allocation1 [shape = 'u32[144,128]{1,0:T(1,128)}', space=vmem, size = 0x12000, scoped, tag = 'internal scratch']
  %s0 = inlined_call_operand.hbm [shape: f32[2,32,256], index: 0, kind: input, shape index: {}]
  %s1 = inlined_call_operand.vmem [shape: f32[32,32], index: 1, kind: input, shape index: {}]
  %s2 = inlined_call_operand.vmem [shape: f32[32,1], index: 2, kind: input, shape index: {}]
  %s3 = inlined_call_operand.vmem [shape: f32[32,32], index: 3, kind: input, shape index: {}]
  %s4 = inlined_call_operand.vmem [shape: f32[32,1], index: 4, kind: input, shape index: {}]
  %s5 = inlined_call_operand.hbm [shape: f32[2,32,256], index: 5, kind: output, shape index: {}]
  %s6 = sld [smem:[#allocation0]]
  $region57: #{tpu_custom_call.1} parent=0
    _
  %s8 = ssub.s32 1, %s6
  %s9 = scalar_select 0, %s8, %s6
  $region1: #{tpu_custom_call.1} parent=0
    #allocation2 [shape = 'u8[65536]{0}', space=vmem, size = 0x10000, scoped, tag = 'input window, operand 0']
    #allocation3 [shape = 's32[2]{0}', space=sflag, size = 0x8, scoped, tag = 'scoped memory for tpu_custom_call.1']
    #allocation4 [shape = 's32[2]{0}', space=sflag, size = 0x8, scoped, tag = 'scoped memory for tpu_custom_call.1']
    #allocation5 [shape = 'u8[65536]{0}', space=vmem, size = 0x10000, scoped, tag = 'output window, operand 0']
    %10 = vsyncpa [#allocation3], 0
    %s11 = scalar_lea.sflag [#allocation3], 1
    %12 = vsyncpa %s11, 0
    %13 = vsyncpa [#allocation4], 0
    %s14 = scalar_lea.sflag [#allocation4], 1
    %15 = vsyncpa %s14, 0
    loop: start=0, step=1, limit=4
    $region2: #{tpu_custom_call.1} parent=1 // loop_pre_header
      _
    $region3: #{tpu_custom_call.1} parent=1 // loop_header
      %s17 = sphi 0, %s21
      %p18 = scmp.ge.s32.totalorder %s17, 4
      %s24 = sphi 0, %s36
      %s25 = sphi 0, %s32
      %s26 = sphi 0, %s24
      %s27 = sphi 0, %s25
      %s28 = sphi 0, %s26
      %s29 = sphi 0, %s27
      %s41 = sphi 0, %s43
      %s44 = sphi 0, %s41
      %s45 = sphi 0, %s44
      %s61 = sphi 0, %s45
      %s65 = sphi 0, %s65
      %s67 = sphi 0, %s65
      %s68 = sphi 0, %s67
      %s82 = sphi 0, %s68
      %s86 = sphi 0, %s86
      %s88 = sphi 0, %s86
      %s89 = sphi 0, %s88
      %s103 = sphi 0, %s89
      %s107 = sphi 0, %s107
      %s109 = sphi 0, %s107
      %s110 = sphi 0, %s109
      %s124 = sphi 0, %s110
      %s128 = sphi 0, %s128
      %s130 = sphi 0, %s128
      %s131 = sphi 0, %s130
      %s145 = sphi 0, %s131
      %s153 = sphi 0, %s155
      %s156 = sphi 0, %s153
      %s157 = sphi 0, %s156
      %s173 = sphi 0, %s157
    $region4: #{tpu_custom_call.1} parent=1 // loop_header_branch
      %20 = sbr.rel (%p18) target = $region8
    $region5: #{tpu_custom_call.1} parent=1 // loop_body
      %s22 = ssub.s32 %s17, 1
      %s23 = ssub.s32 %s17, 2
      %s30 = sadd.s32 1, %s25
      %p31 = scmp.ge.s32.totalorder %s30, 1
      %s32 = scalar_select %p31, 0, %s30
      %s33 = sadd.s32 1, %s24
      %s34 = scalar_select %p31, %s33, %s24
      %p35 = scmp.ge.s32.totalorder %s34, 2
      %s36 = scalar_select %p35, 0, %s34
      %s37 = ssub.s32 %s24, %s36
      %s38 = ssub.s32 %s25, %s32
      %s39 = sor.u32 %s37, %s38
      %p40 = scmp.eq.s32.totalorder %s39, 0
      %s42 = sadd.s32 %s41, 1
      %s43 = scalar_select %p40, %s41, %s42
      %p46 = pneg %p40
      %p47 = scmp.eq.s32.totalorder %s17, 1
      %p48 = por %p46, %p47
      %p49 = scmp.ne.s32.totalorder %s41, %s44
      %p50 = scmp.eq.s32.totalorder %s17, 0
      %p51 = por %p49, %p50
      %p52 = scmp.ne.s32.totalorder %s41, %s44
      %p53 = scmp.eq.s32.totalorder %s22, 1
      %p54 = por %p52, %p53
      %p55 = scmp.ne.s32.totalorder %s44, %s45
      %p56 = scmp.eq.s32.totalorder %s22, 0
      %p57 = por %p55, %p56
      %p58 = scmp.ne.s32.totalorder %s44, %s45
      %p59 = scmp.eq.s32.totalorder %s23, 1
      %p60 = por %p58, %p59
      %p62 = scmp.ne.s32.totalorder %s45, %s61
      %p63 = scmp.eq.s32.totalorder %s23, 0
      %p64 = por %p62, %p63
      %s66 = sadd.s32 %s65, 1
      %p69 = scmp.eq.s32.totalorder %s17, 1
      %p70 = scmp.ne.s32.totalorder %s65, %s67
      %p71 = scmp.eq.s32.totalorder %s17, 0
      %p72 = por %p70, %p71
      %p73 = scmp.ne.s32.totalorder %s65, %s67
      %p74 = scmp.eq.s32.totalorder %s22, 1
      %p75 = por %p73, %p74
      %p76 = scmp.ne.s32.totalorder %s67, %s68
      %p77 = scmp.eq.s32.totalorder %s22, 0
      %p78 = por %p76, %p77
      %p79 = scmp.ne.s32.totalorder %s67, %s68
      %p80 = scmp.eq.s32.totalorder %s23, 1
      %p81 = por %p79, %p80
      %p83 = scmp.ne.s32.totalorder %s68, %s82
      %p84 = scmp.eq.s32.totalorder %s23, 0
      %p85 = por %p83, %p84
      %s87 = sadd.s32 %s86, 1
      %p90 = scmp.eq.s32.totalorder %s17, 1
      %p91 = scmp.ne.s32.totalorder %s86, %s88
      %p92 = scmp.eq.s32.totalorder %s17, 0
      %p93 = por %p91, %p92
      %p94 = scmp.ne.s32.totalorder %s86, %s88
      %p95 = scmp.eq.s32.totalorder %s22, 1
      %p96 = por %p94, %p95
      %p97 = scmp.ne.s32.totalorder %s88, %s89
      %p98 = scmp.eq.s32.totalorder %s22, 0
      %p99 = por %p97, %p98
      %p100 = scmp.ne.s32.totalorder %s88, %s89
      %p101 = scmp.eq.s32.totalorder %s23, 1
      %p102 = por %p100, %p101
      %p104 = scmp.ne.s32.totalorder %s89, %s103
      %p105 = scmp.eq.s32.totalorder %s23, 0
      %p106 = por %p104, %p105
      %s108 = sadd.s32 %s107, 1
      %p111 = scmp.eq.s32.totalorder %s17, 1
      %p112 = scmp.ne.s32.totalorder %s107, %s109
      %p113 = scmp.eq.s32.totalorder %s17, 0
      %p114 = por %p112, %p113
      %p115 = scmp.ne.s32.totalorder %s107, %s109
      %p116 = scmp.eq.s32.totalorder %s22, 1
      %p117 = por %p115, %p116
      %p118 = scmp.ne.s32.totalorder %s109, %s110
      %p119 = scmp.eq.s32.totalorder %s22, 0
      %p120 = por %p118, %p119
      %p121 = scmp.ne.s32.totalorder %s109, %s110
      %p122 = scmp.eq.s32.totalorder %s23, 1
      %p123 = por %p121, %p122
      %p125 = scmp.ne.s32.totalorder %s110, %s124
      %p126 = scmp.eq.s32.totalorder %s23, 0
      %p127 = por %p125, %p126
      %s129 = sadd.s32 %s128, 1
      %p132 = scmp.eq.s32.totalorder %s17, 1
      %p133 = scmp.ne.s32.totalorder %s128, %s130
      %p134 = scmp.eq.s32.totalorder %s17, 0
      %p135 = por %p133, %p134
      %p136 = scmp.ne.s32.totalorder %s128, %s130
      %p137 = scmp.eq.s32.totalorder %s22, 1
      %p138 = por %p136, %p137
      %p139 = scmp.ne.s32.totalorder %s130, %s131
      %p140 = scmp.eq.s32.totalorder %s22, 0
      %p141 = por %p139, %p140
      %p142 = scmp.ne.s32.totalorder %s130, %s131
      %p143 = scmp.eq.s32.totalorder %s23, 1
      %p144 = por %p142, %p143
      %p146 = scmp.ne.s32.totalorder %s131, %s145
      %p147 = scmp.eq.s32.totalorder %s23, 0
      %p148 = por %p146, %p147
      %s149 = ssub.s32 %s24, %s36
      %s150 = ssub.s32 %s25, %s32
      %s151 = sor.u32 %s149, %s150
      %p152 = scmp.eq.s32.totalorder %s151, 0
      %s154 = sadd.s32 %s153, 1
      %s155 = scalar_select %p152, %s153, %s154
      %p158 = pneg %p152
      %p159 = scmp.eq.s32.totalorder %s17, 1
      %p160 = por %p158, %p159
      %p161 = scmp.ne.s32.totalorder %s153, %s156
      %p162 = scmp.eq.s32.totalorder %s17, 0
      %p163 = por %p161, %p162
      %p164 = scmp.ne.s32.totalorder %s153, %s156
      %p165 = scmp.eq.s32.totalorder %s22, 1
      %p166 = por %p164, %p165
      %p167 = scmp.ne.s32.totalorder %s156, %s157
      %p168 = scmp.eq.s32.totalorder %s22, 0
      %p169 = por %p167, %p168
      %p170 = scmp.ne.s32.totalorder %s156, %s157
      %p171 = scmp.eq.s32.totalorder %s23, 1
      %p172 = por %p170, %p171
      %p174 = scmp.ne.s32.totalorder %s157, %s173
      %p175 = scmp.eq.s32.totalorder %s23, 0
      %p176 = por %p174, %p175
      %p177 = scmp.le.s32.totalorder 1, %s17
      %p178 = scmp.lt.s32.totalorder %s17, 3
      %p179 = pnand %p177, %p178
      %p180 = pneg %p179
      // Predicated region
      $region9: #{tpu_custom_call.1} parent=5 // pred_check
        _
      $region10: #{tpu_custom_call.1} parent=5 // pred_check_branch
        %182 = sbr.rel (%p179) target = $region12
      $region11: #{tpu_custom_call.1} parent=5 // pred_region
        %s183 = ssub.s32 %s17, 1
        // Predicated region
        $region13: #{tpu_custom_call.1} parent=11 // pred_check
          %p184 = pneg %p78
        $region14: #{tpu_custom_call.1} parent=11 // pred_check_branch
          %186 = sbr.rel (%p184) target = $region16
        $region15: #{tpu_custom_call.1} parent=11 // pred_region
          _
        $region16: #{tpu_custom_call.1} parent=11 // pred_fallthru
          _
        // Predicated region
        $region17: #{tpu_custom_call.1} parent=11 // pred_check
          %p187 = pneg %p99
        $region18: #{tpu_custom_call.1} parent=11 // pred_check_branch
          %189 = sbr.rel (%p187) target = $region20
        $region19: #{tpu_custom_call.1} parent=11 // pred_region
          _
        $region20: #{tpu_custom_call.1} parent=11 // pred_fallthru
          _
        // Predicated region
        $region21: #{tpu_custom_call.1} parent=11 // pred_check
          %p190 = pneg %p120
        $region22: #{tpu_custom_call.1} parent=11 // pred_check_branch
          %192 = sbr.rel (%p190) target = $region24
        $region23: #{tpu_custom_call.1} parent=11 // pred_region
          _
        $region24: #{tpu_custom_call.1} parent=11 // pred_fallthru
          _
        // Predicated region
        $region25: #{tpu_custom_call.1} parent=11 // pred_check
          %p193 = pneg %p141
        $region26: #{tpu_custom_call.1} parent=11 // pred_check_branch
          %195 = sbr.rel (%p193) target = $region28
        $region27: #{tpu_custom_call.1} parent=11 // pred_region
          _
        $region28: #{tpu_custom_call.1} parent=11 // pred_fallthru
          _
      $region12: #{tpu_custom_call.1} parent=5 // pred_fallthru
        _
      %p196 = scmp.lt.s32.totalorder %s17, 2
      // Predicated region
      $region29: #{tpu_custom_call.1} parent=5 // pred_check
        %p197 = pneg %p196
      $region30: #{tpu_custom_call.1} parent=5 // pred_check_branch
        %199 = sbr.rel (%p197) target = $region32
      $region31: #{tpu_custom_call.1} parent=5 // pred_region
        // Predicated region
        $region33: #{tpu_custom_call.1} parent=31 // pred_check
          %p200 = pneg %p51
        $region34: #{tpu_custom_call.1} parent=31 // pred_check_branch
          %202 = sbr.rel (%p200) target = $region36
        $region35: #{tpu_custom_call.1} parent=31 // pred_region
          %s203 = sand.u32 %s41, 1
          %s204 = scalar_lea.sflag [#allocation3], %s203
          %s205 = sand.u32 %s41, 1
          %s206 = smul.addr %s205, 64
          %s207 = scalar_lea.vmem [#allocation2], %s206
          %s208 = smul.u32 2, %s25
          %s210 = ssub.s32 1024, 1024
          %211 = vsyncadd %s204, %s210
          %s212 = smul.addr %s24, 8
          %s213 = sadd.s32 %s208, %s212
          %s214 = smul.addr %s213, 128
          %s215 = scalar_lea.hbm %s0, %s214
          %s216 = sshll.u32 %s207, 4
          %s217 = int_to_ptr.vmem [resolvable:$true] %s216
          %222 = dma.hbm_to_vmem [thread:$0]  %s215, 1024, %s217, %s204, 256, 256, 16
        $region36: #{tpu_custom_call.1} parent=31 // pred_fallthru
          _
      $region32: #{tpu_custom_call.1} parent=5 // pred_fallthru
        _
      %p223 = scmp.le.s32.totalorder 1, %s17
      %p224 = scmp.lt.s32.totalorder %s17, 3
      %p225 = pnand %p223, %p224
      %p226 = pneg %p225
      // Predicated region
      $region37: #{tpu_custom_call.1} parent=5 // pred_check
        _
      $region38: #{tpu_custom_call.1} parent=5 // pred_check_branch
        %228 = sbr.rel (%p225) target = $region40
      $region39: #{tpu_custom_call.1} parent=5 // pred_region
        %s229 = ssub.s32 %s17, 1
        %s230 = sand.u32 %s44, 1
        %s231 = scalar_lea.sflag [#allocation3], %s230
        %s232 = sand.u32 %s44, 1
        %s233 = smul.addr %s232, 64
        %s234 = scalar_lea.vmem [#allocation2], %s233
        // Predicated region
        $region41: #{tpu_custom_call.1} parent=39 // pred_check
          %p235 = pneg %p57
        $region42: #{tpu_custom_call.1} parent=39 // pred_check_branch
          %237 = sbr.rel (%p235) target = $region44
        $region43: #{tpu_custom_call.1} parent=39 // pred_region
          %238 = dma.done %s231, 1024
        $region44: #{tpu_custom_call.1} parent=39 // pred_fallthru
          _
        %s239 = sand.u32 %s44, 1
        %s240 = scalar_lea.sflag [#allocation3], %s239
        %s241 = sand.u32 %s44, 1
        %s242 = smul.addr %s241, 64
        %s243 = scalar_lea.vmem [#allocation2], %s242
        %p244 = pneg %p57
        %p245 = pneg %p54
        %p246 = pneg %p78
        %p247 = pneg %p75
        %p248 = pneg %p99
        %p249 = pneg %p96
        %p250 = pneg %p120
        %p251 = pneg %p117
        %p252 = pneg %p141
        %p253 = pneg %p138
        %p254 = pneg %p169
        %p255 = pneg %p166
        %s256 = sand.u32 %s156, 1
        %s257 = scalar_lea.sflag [#allocation4], %s256
        %s258 = sand.u32 %s156, 1
        %s259 = smul.addr %s258, 64
        %s260 = scalar_lea.vmem [#allocation5], %s259
        %s261 = smul.u32 2, %s27
        %s262 = smul.u32 2, %s27
        %v263 = vld [vmem:[%s1] sm:$0xff]
        %v264 = vld [vmem:[%s1 + $0x8] sm:$0xff]
        %v265 = vld [vmem:[%s1 + $0x10] sm:$0xff]
        %v266 = vld [vmem:[%s1 + $0x18] sm:$0xff]
        %v267 = vld [vmem:[%s3] sm:$0xff]
        %v268 = vld [vmem:[%s3 + $0x8] sm:$0xff]
        %v269 = vld [vmem:[%s3 + $0x10] sm:$0xff]
        %v270 = vld [vmem:[%s3 + $0x18] sm:$0xff]
        %v271 = vld [vmem:[%s2] sm:$0xff]
        %v272 = vld [vmem:[%s2 + $0x8] sm:$0xff]
        %v273 = vld [vmem:[%s2 + $0x10] sm:$0xff]
        %v274 = vld [vmem:[%s2 + $0x18] sm:$0xff]
        %v275 = vld [vmem:[%s4] sm:$0xff]
        %v276 = vld [vmem:[%s4 + $0x8] sm:$0xff]
        %v277 = vld [vmem:[%s4 + $0x10] sm:$0xff]
        %v278 = vld [vmem:[%s4 + $0x18] sm:$0xff]
        %v279 = vld [vmem:[%s234] sm:$0xff]
        %v280 = vld [vmem:[%s234 + $0x8] sm:$0xff]
        %v281 = vld [vmem:[%s234 + $0x10] sm:$0xff]
        %v282 = vld [vmem:[%s234 + $0x18] sm:$0xff]
        %v283 = vld [vmem:[%s234 + $0x20] sm:$0xff]
        %v284 = vld [vmem:[%s234 + $0x28] sm:$0xff]
        %v285 = vld [vmem:[%s234 + $0x30] sm:$0xff]
        %v286 = vld [vmem:[%s234 + $0x38] sm:$0xff]
        %288 = vset.pattern.permute.xlu0 0
        %289 = vperm.xlu0 %288, %v271
        %v290 = vpop.permute.xlu0 %289
        %293 = vset.pattern.permute.xlu0 0
        %294 = vperm.xlu0 %293, %v272
        %v295 = vpop.permute.xlu0 %294
        %298 = vset.pattern.permute.xlu0 0
        %299 = vperm.xlu0 %298, %v273
        %v300 = vpop.permute.xlu0 %299
        %303 = vset.pattern.permute.xlu0 0
        %304 = vperm.xlu0 %303, %v274
        %v305 = vpop.permute.xlu0 %304
        %vm307 = vcmask 261120
        %v309 = vsel %vm307, %v263, 0
        %v312 = vsel %vm307, %v264, 0
        %v315 = vsel %vm307, %v265, 0
        %v318 = vsel %vm307, %v266, 0
        %320 = vmatprep.subr.mxu0 %v280
        %321 = vmatpush1.msra.mxu0 %v279
        %322 = vmatprep.subr.mxu0 %v282
        %323 = vmatpush1.msra.mxu0 %v281
        %324 = vmatprep.subr.mxu0 %v284
        %325 = vmatpush1.msra.mxu0 %v283
        %326 = vmatprep.subr.mxu0 %v286
        %327 = vmatpush1.msra.mxu0 %v285
        %328 = vmatprep.subr.mxu0 0.0
        %329 = vmatpush1.msra.mxu0 0.0
        %330 = vmatprep.subr.mxu0 0.0
        %331 = vmatpush1.msra.mxu0 0.0
        %332 = vmatprep.subr.mxu0 0.0
        %333 = vmatpush1.msra.mxu0 0.0
        %334 = vmatprep.subr.mxu0 0.0
        %335 = vmatpush1.msra.mxu0 0.0
        %336 = vmatprep.subr.mxu0 0.0
        %337 = vmatpush1.msra.mxu0 0.0
        %338 = vmatprep.subr.mxu0 0.0
        %339 = vmatpush1.msra.mxu0 0.0
        %340 = vmatprep.subr.mxu0 0.0
        %341 = vmatpush1.msra.mxu0 0.0
        %342 = vmatprep.subr.mxu0 0.0
        %343 = vmatpush1.msra.mxu0 0.0
        %344 = vmatprep.subr.mxu0 0.0
        %345 = vmatpush1.msra.mxu0 0.0
        %346 = vmatprep.subr.mxu0 0.0
        %347 = vmatpush1.msra.mxu0 0.0
        %348 = vmatprep.subr.mxu0 0.0
        %349 = vmatpush1.msra.mxu0 0.0
        %350 = vmatprep.subr.mxu0 0.0
        %351 = vmatpush1.msra.mxu0 0.0
        %352 = vmatprep.subr.mxu0 0.0
        %353 = vmatpush1.msra.mxu0 0.0
        %354 = vmatprep.subr.mxu0 0.0
        %355 = vmatpush1.msra.mxu0 0.0
        %356 = vmatprep.subr.mxu0 0.0
        %357 = vmatpush1.msra.mxu0 0.0
        %358 = vmatprep.subr.mxu0 0.0
        %359 = vmatpush1.msra.mxu0 0.0
        %360 = vmatprep.subr.mxu0 0.0
        %361 = vmatpush1.msra.mxu0 0.0
        %362 = vmatprep.subr.mxu0 0.0
        %363 = vmatpush1.msra.mxu0 0.0
        %364 = vmatprep.subr.mxu0 0.0
        %365 = vmatpush1.msra.mxu0 0.0
        %366 = vmatprep.subr.mxu0 0.0
        %367 = vmatpush1.msra.mxu0 0.0
        %368 = vmatprep.subr.mxu0 0.0
        %369 = vmatpush1.msra.mxu0 0.0
        %370 = vmatprep.subr.mxu0 0.0
        %371 = vmatpush1.msra.mxu0 0.0
        %372 = vmatprep.subr.mxu0 0.0
        %373 = vmatpush1.msra.mxu0 0.0
        %374 = vmatprep.subr.mxu0 0.0
        %375 = vmatpush1.msra.mxu0 0.0
        %376 = vmatprep.subr.mxu0 0.0
        %377 = vmatpush1.msra.mxu0 0.0
        %378 = vmatprep.subr.mxu0 0.0
        %379 = vmatpush1.msra.mxu0 0.0
        %380 = vmatprep.subr.mxu0 0.0
        %381 = vmatpush1.msra.mxu0 0.0
        %382 = vmatprep.subr.mxu0 0.0
        %383 = vmatpush1.msra.mxu0 0.0
        %384 = vmatprep.mubr.f32.mxu0 0.0
        %385 = vmatmul.mubr.f32.gmra.mrb[0].mxu0 %v309
        %v386 = vpop.f32.mrb[0].mxu0
        %v387 = vadd.f32 %v290, %v386
        %v388 = vpop.f32.mrb[0].mxu0
        %v389 = vadd.f32 %v290, %v388
        %390 = vmatprep.mubr.f32.mxu0 0.0
        %391 = vmatmul.mubr.f32.gmra.mrb[0].mxu0 %v312
        %v392 = vpop.f32.mrb[0].mxu0
        %v393 = vadd.f32 %v295, %v392
        %v394 = vpop.f32.mrb[0].mxu0
        %v395 = vadd.f32 %v295, %v394
        %396 = vmatprep.mubr.f32.mxu0 0.0
        %397 = vmatmul.mubr.f32.gmra.mrb[0].mxu0 %v315
        %v398 = vpop.f32.mrb[0].mxu0
        %v399 = vadd.f32 %v300, %v398
        %v400 = vpop.f32.mrb[0].mxu0
        %v401 = vadd.f32 %v300, %v400
        %402 = vmatprep.mubr.f32.mxu0 0.0
        %403 = vmatmul.mubr.f32.gmra.mrb[0].mxu0 %v318
        %v404 = vpop.f32.mrb[0].mxu0
        %v405 = vadd.f32 %v305, %v404
        %v406 = vpop.f32.mrb[0].mxu0
        %v407 = vadd.f32 %v305, %v406
        %408 = vdwg.mxu0
        %v409 = vmax.f32 %v387, 0.0
        %v410 = vmax.f32 %v389, 0.0
        %v411 = vmax.f32 %v393, 0.0
        %v412 = vmax.f32 %v395, 0.0
        %v413 = vmax.f32 %v399, 0.0
        %v414 = vmax.f32 %v401, 0.0
        %v415 = vmax.f32 %v405, 0.0
        %v416 = vmax.f32 %v407, 0.0
        %418 = vset.pattern.permute.xlu0 0
        %419 = vperm.xlu0 %418, %v275
        %v420 = vpop.permute.xlu0 %419
        %423 = vset.pattern.permute.xlu0 0
        %424 = vperm.xlu0 %423, %v276
        %v425 = vpop.permute.xlu0 %424
        %428 = vset.pattern.permute.xlu0 0
        %429 = vperm.xlu0 %428, %v277
        %v430 = vpop.permute.xlu0 %429
        %433 = vset.pattern.permute.xlu0 0
        %434 = vperm.xlu0 %433, %v278
        %v435 = vpop.permute.xlu0 %434
        %v438 = vsel %vm307, %v267, 0
        %v441 = vsel %vm307, %v268, 0
        %v444 = vsel %vm307, %v269, 0
        %v447 = vsel %vm307, %v270, 0
        %449 = vmatprep.subr.mxu0 %v410
        %450 = vmatpush1.msra.mxu0 %v409
        %451 = vmatprep.subr.mxu0 %v412
        %452 = vmatpush1.msra.mxu0 %v411
        %453 = vmatprep.subr.mxu0 %v414
        %454 = vmatpush1.msra.mxu0 %v413
        %455 = vmatprep.subr.mxu0 %v416
        %456 = vmatpush1.msra.mxu0 %v415
        %457 = vmatprep.subr.mxu0 0.0
        %458 = vmatpush1.msra.mxu0 0.0
        %459 = vmatprep.subr.mxu0 0.0
        %460 = vmatpush1.msra.mxu0 0.0
        %461 = vmatprep.subr.mxu0 0.0
        %462 = vmatpush1.msra.mxu0 0.0
        %463 = vmatprep.subr.mxu0 0.0
        %464 = vmatpush1.msra.mxu0 0.0
        %465 = vmatprep.subr.mxu0 0.0
        %466 = vmatpush1.msra.mxu0 0.0
        %467 = vmatprep.subr.mxu0 0.0
        %468 = vmatpush1.msra.mxu0 0.0
        %469 = vmatprep.subr.mxu0 0.0
        %470 = vmatpush1.msra.mxu0 0.0
        %471 = vmatprep.subr.mxu0 0.0
        %472 = vmatpush1.msra.mxu0 0.0
        %473 = vmatprep.subr.mxu0 0.0
        %474 = vmatpush1.msra.mxu0 0.0
        %475 = vmatprep.subr.mxu0 0.0
        %476 = vmatpush1.msra.mxu0 0.0
        %477 = vmatprep.subr.mxu0 0.0
        %478 = vmatpush1.msra.mxu0 0.0
        %479 = vmatprep.subr.mxu0 0.0
        %480 = vmatpush1.msra.mxu0 0.0
        %481 = vmatprep.subr.mxu0 0.0
        %482 = vmatpush1.msra.mxu0 0.0
        %483 = vmatprep.subr.mxu0 0.0
        %484 = vmatpush1.msra.mxu0 0.0
        %485 = vmatprep.subr.mxu0 0.0
        %486 = vmatpush1.msra.mxu0 0.0
        %487 = vmatprep.subr.mxu0 0.0
        %488 = vmatpush1.msra.mxu0 0.0
        %489 = vmatprep.subr.mxu0 0.0
        %490 = vmatpush1.msra.mxu0 0.0
        %491 = vmatprep.subr.mxu0 0.0
        %492 = vmatpush1.msra.mxu0 0.0
        %493 = vmatprep.subr.mxu0 0.0
        %494 = vmatpush1.msra.mxu0 0.0
        %495 = vmatprep.subr.mxu0 0.0
        %496 = vmatpush1.msra.mxu0 0.0
        %497 = vmatprep.subr.mxu0 0.0
        %498 = vmatpush1.msra.mxu0 0.0
        %499 = vmatprep.subr.mxu0 0.0
        %500 = vmatpush1.msra.mxu0 0.0
        %501 = vmatprep.subr.mxu0 0.0
        %502 = vmatpush1.msra.mxu0 0.0
        %503 = vmatprep.subr.mxu0 0.0
        %504 = vmatpush1.msra.mxu0 0.0
        %505 = vmatprep.subr.mxu0 0.0
        %506 = vmatpush1.msra.mxu0 0.0
        %507 = vmatprep.subr.mxu0 0.0
        %508 = vmatpush1.msra.mxu0 0.0
        %509 = vmatprep.subr.mxu0 0.0
        %510 = vmatpush1.msra.mxu0 0.0
        %511 = vmatprep.subr.mxu0 0.0
        %512 = vmatpush1.msra.mxu0 0.0
        %513 = vmatprep.mubr.f32.mxu0 0.0
        %514 = vmatmul.mubr.f32.gmra.mrb[0].mxu0 %v438
        %v515 = vpop.f32.mrb[0].mxu0
        %v516 = vadd.f32 %v420, %v515
        %v517 = vpop.f32.mrb[0].mxu0
        %v518 = vadd.f32 %v420, %v517
        %519 = vmatprep.mubr.f32.mxu0 0.0
        %520 = vmatmul.mubr.f32.gmra.mrb[0].mxu0 %v441
        %v521 = vpop.f32.mrb[0].mxu0
        %v522 = vadd.f32 %v425, %v521
        %v523 = vpop.f32.mrb[0].mxu0
        %v524 = vadd.f32 %v425, %v523
        %525 = vmatprep.mubr.f32.mxu0 0.0
        %526 = vmatmul.mubr.f32.gmra.mrb[0].mxu0 %v444
        %v527 = vpop.f32.mrb[0].mxu0
        %v528 = vadd.f32 %v430, %v527
        %v529 = vpop.f32.mrb[0].mxu0
        %v530 = vadd.f32 %v430, %v529
        %531 = vmatprep.mubr.f32.mxu0 0.0
        %532 = vmatmul.mubr.f32.gmra.mrb[0].mxu0 %v447
        %v533 = vpop.f32.mrb[0].mxu0
        %v534 = vadd.f32 %v435, %v533
        %v535 = vpop.f32.mrb[0].mxu0
        %v536 = vadd.f32 %v435, %v535
        %537 = vdwg.mxu0
        %v538 = vxor.u32 %v516, 2147483648
        %v539 = vxor.u32 %v518, 2147483648
        %v540 = vxor.u32 %v522, 2147483648
        %v541 = vxor.u32 %v524, 2147483648
        %v542 = vxor.u32 %v528, 2147483648
        %v543 = vxor.u32 %v530, 2147483648
        %v544 = vxor.u32 %v534, 2147483648
        %v545 = vxor.u32 %v536, 2147483648
        %v546 = vmul.f32 %v538, 1.442695
        %v547 = vpow.pop %v546
        %v548 = vmul.f32 %v539, 1.442695
        %v549 = vpow.pop %v548
        %v550 = vmul.f32 %v540, 1.442695
        %v551 = vpow.pop %v550
        %v552 = vmul.f32 %v541, 1.442695
        %v553 = vpow.pop %v552
        %v554 = vmul.f32 %v542, 1.442695
        %v555 = vpow.pop %v554
        %v556 = vmul.f32 %v543, 1.442695
        %v557 = vpow.pop %v556
        %v558 = vmul.f32 %v544, 1.442695
        %v559 = vpow.pop %v558
        %v560 = vmul.f32 %v545, 1.442695
        %v561 = vpow.pop %v560
        %v562 = vadd.f32 %v547, 1.0
        %v563 = vadd.f32 %v549, 1.0
        %v564 = vadd.f32 %v551, 1.0
        %v565 = vadd.f32 %v553, 1.0
        %v566 = vadd.f32 %v555, 1.0
        %v567 = vadd.f32 %v557, 1.0
        %v568 = vadd.f32 %v559, 1.0
        %v569 = vadd.f32 %v561, 1.0
        %v570 = vrcp.pop %v562
        %v571 = vmul.f32 1.0, %v570
        %v572 = vrcp.pop %v563
        %v573 = vmul.f32 1.0, %v572
        %v574 = vrcp.pop %v564
        %v575 = vmul.f32 1.0, %v574
        %v576 = vrcp.pop %v565
        %v577 = vmul.f32 1.0, %v576
        %v578 = vrcp.pop %v566
        %v579 = vmul.f32 1.0, %v578
        %v580 = vrcp.pop %v567
        %v581 = vmul.f32 1.0, %v580
        %v582 = vrcp.pop %v568
        %v583 = vmul.f32 1.0, %v582
        %v584 = vrcp.pop %v569
        %v585 = vmul.f32 1.0, %v584
        %586 = vst [vmem:[%s260] sm:$0xff] %v571
        %587 = vst [vmem:[%s260 + $0x8] sm:$0xff] %v573
        %588 = vst [vmem:[%s260 + $0x10] sm:$0xff] %v575
        %589 = vst [vmem:[%s260 + $0x18] sm:$0xff] %v577
        %590 = vst [vmem:[%s260 + $0x20] sm:$0xff] %v579
        %591 = vst [vmem:[%s260 + $0x28] sm:$0xff] %v581
        %592 = vst [vmem:[%s260 + $0x30] sm:$0xff] %v583
        %593 = vst [vmem:[%s260 + $0x38] sm:$0xff] %v585
        %s594 = sand.u32 %s156, 1
        %s595 = scalar_lea.sflag [#allocation4], %s594
        %s596 = sand.u32 %s156, 1
        %s597 = smul.addr %s596, 64
        %s598 = scalar_lea.vmem [#allocation5], %s597
        // Predicated region
        $region45: #{tpu_custom_call.1} parent=39 // pred_check
          %p599 = pneg %p166
        $region46: #{tpu_custom_call.1} parent=39 // pred_check_branch
          %601 = sbr.rel (%p599) target = $region48
        $region47: #{tpu_custom_call.1} parent=39 // pred_region
          %s602 = smul.u32 2, %s27
          %s604 = ssub.s32 1024, 1024
          %605 = vsyncadd %s595, %s604
          %s606 = smul.addr %s26, 8
          %s607 = sadd.s32 %s602, %s606
          %s608 = smul.addr %s607, 128
          %s609 = scalar_lea.hbm %s5, %s608
          %s610 = sshll.u32 %s598, 4
          %s611 = int_to_ptr.vmem [resolvable:$true] %s610
          %616 = dma.vmem_to_hbm [thread:$0]  %s611, 1024, %s609, %s595, 256, 256, 16
        $region48: #{tpu_custom_call.1} parent=39 // pred_fallthru
          _
      $region40: #{tpu_custom_call.1} parent=5 // pred_fallthru
        _
      %p617 = scmp.le.s32.totalorder 2, %s17
      // Predicated region
      $region49: #{tpu_custom_call.1} parent=5 // pred_check
        %p618 = pneg %p617
      $region50: #{tpu_custom_call.1} parent=5 // pred_check_branch
        %620 = sbr.rel (%p618) target = $region52
      $region51: #{tpu_custom_call.1} parent=5 // pred_region
        %s621 = ssub.s32 %s17, 2
        // Predicated region
        $region53: #{tpu_custom_call.1} parent=51 // pred_check
          %p622 = pneg %p172
        $region54: #{tpu_custom_call.1} parent=51 // pred_check_branch
          %624 = sbr.rel (%p622) target = $region56
        $region55: #{tpu_custom_call.1} parent=51 // pred_region
          %s625 = sand.u32 %s157, 1
          %s626 = scalar_lea.sflag [#allocation4], %s625
          %s627 = sand.u32 %s157, 1
          %s628 = smul.addr %s627, 64
          %s629 = scalar_lea.vmem [#allocation5], %s628
          %630 = dma.done %s626, 1024
        $region56: #{tpu_custom_call.1} parent=51 // pred_fallthru
          _
      $region52: #{tpu_custom_call.1} parent=5 // pred_fallthru
        _
    $region6: #{tpu_custom_call.1} parent=1 // loop_footer
      %s21 = sadd.s32 1, %s17
    $region7: #{tpu_custom_call.1} parent=1 // loop_footer_branch
      %16 = sbr.rel target = $region3
    $region8: #{tpu_custom_call.1} parent=1 // loop_exit
      _
    %631 = vsyncpa [#allocation3], 1
    %s632 = scalar_lea.sflag [#allocation3], 1
    %633 = vsyncpa %s632, 1
    %634 = vsyncpa [#allocation4], 1
    %s635 = scalar_lea.sflag [#allocation4], 1
    %636 = vsyncpa %s635, 1

</llo_original>
